<compile_context>
chip_gen: v7x
topology: tpu7x:2x2x1
jax: 0.10.0
libtpu: 0.0.40
codegen_flags: <defaults>
</compile_context>

<pallas_src>
import functools

import jax
import jax.numpy as jnp
from jax.experimental import pallas as pl
from jax.experimental.pallas import tpu as pltpu


def _vmem_capacity_bytes():
    try:
        return int(pltpu.get_tpu_info().vmem_capacity_bytes)
    except Exception:
        return 64 * 1024 * 1024  # conservative fallback (v7x per-TC VMEM)


def _pick_tiles(B, S, H, vmem_cap):
    """Choose (TB, SC): batch elements per step and sequence rows per chunk."""
    TB = min(B, 8)  # sublane-dense output when B >= 8; full-B block otherwise

    # Conservative per-step footprint model (bytes):
    #   x f32 double buffer        : 2 * TB*SC*H*4
    #   in-kernel bf16 x + f32 h   : TB*SC*H*(2 + 4)
    #   bf16 weight (1-buffered)   : H*H*2
    #   bias + acc + out buffers   : small
    fixed = H * H * 2 + H * 8 + 3 * TB * H * 4
    per_sc_row = TB * H * (2 * 4 + 2 + 4)
    budget = int(0.6 * vmem_cap)
    max_sc = max(8, (budget - fixed) // max(1, per_sc_row))

    target_sc = max(8, 1024 // TB)      # ~1024 MXU rows per step
    sc = min(S, target_sc, max_sc)
    if sc < S:
        sc = max(8, (sc // 8) * 8)      # sublane-aligned chunks (free reshape)
    return TB, sc


def _encoder_kernel(x_ref, w_ref, b_ref, o_ref, acc_ref, *,
                    seq_len, sc, normalize):
    # x_ref  : (TB, SC, H) f32 token-embedding chunk (cast to bf16 in-kernel)
    # w_ref  : (H, H)      bf16 shared dense weight (single-buffered)
    # b_ref  : (1, H)      f32 bias (single-buffered)
    # o_ref  : (TB, H)     pooled (optionally normalized) embeddings
    # acc_ref: (TB, H)     f32 sequence-sum accumulator (scratch)
    si = pl.program_id(1)
    ns = pl.num_programs(1)

    @pl.when(si == 0)
    def _():
        acc_ref[...] = jnp.zeros_like(acc_ref)

    x = x_ref[...]                                   # (TB, SC, H) f32
    tb, sc_, h_dim = x.shape
    # bf16 MXU operands, f32 accumulation.  SC % 8 == 0 (or SC == S) so the
    # reshape is tile-aligned — no VMEM relayout.
    xb = x.reshape(tb * sc_, h_dim).astype(jnp.bfloat16)
    w = w_ref[...]                                   # (H, H) bf16
    b = b_ref[...]                                   # (1, H) f32

    h = jnp.dot(xb, w, preferred_element_type=jnp.float32) + b
    h = jnp.tanh(h)                                  # (TB*SC, H) f32
    h = h.reshape(tb, sc_, h_dim)

    # Mask rows beyond the true sequence length (last chunk may be ragged /
    # contain unspecified out-of-bounds data).
    row = jax.lax.broadcasted_iota(jnp.int32, (tb, sc_, 1), 1)
    valid = (si * sc + row) < seq_len
    h = jnp.where(valid, h, 0.0)

    acc_ref[...] += jnp.sum(h, axis=1)               # (TB, H)

    @pl.when(si == ns - 1)
    def _():
        pooled = acc_ref[...] * (1.0 / seq_len)      # mean pool
        if normalize:
            # L2 normalize along hidden dim (matches F.normalize(dim=-1) up
            # to eps handling for near-zero embeddings).
            sq = jnp.sum(pooled * pooled, axis=-1, keepdims=True)
            pooled = pooled * jax.lax.rsqrt(sq + 1e-12)
        o_ref[...] = pooled.astype(o_ref.dtype)


def base_encoder_forward(x, w, b, *, normalize=True, out_dtype=jnp.float32):
    """x: [B, S, H] f32 token embeddings -> [B, H] pooled sentence embeddings.

    w: [H, H] dense weight, b: [1, H] bias of the context embedder head.
    Set out_dtype=jnp.bfloat16 if downstream consumers accept bf16 embeddings
    (halves output HBM writeback); math stays f32 either way.
    """
    B, S, H = x.shape
    cap = _vmem_capacity_bytes()
    TB, SC = _pick_tiles(B, S, H, cap)

    # Constant parameters: one-off casts, negligible vs activation traffic.
    w_bf = w.astype(jnp.bfloat16)
    b_f32 = b.astype(jnp.float32)

    grid = (pl.cdiv(B, TB), pl.cdiv(S, SC))

    # Actual per-step VMEM footprint (see _pick_tiles model), capped to chip.
    need = (2 * TB * SC * H * 4          # x double buffer (f32)
            + TB * SC * H * (2 + 4)      # in-kernel bf16 x + f32 h
            + H * H * 2                  # bf16 weight, single buffer
            + H * 8                      # bias
            + TB * H * 4                 # acc scratch
            + 2 * TB * H * 4)            # out double buffer
    vmem_limit = min(int(0.85 * cap), max(int(need * 1.25), 8 * 1024 * 1024))

    kernel = functools.partial(_encoder_kernel,
                               seq_len=S, sc=SC, normalize=normalize)

    out = pl.pallas_call(
        kernel,
        out_shape=jax.ShapeDtypeStruct((B, H), out_dtype),
        grid_spec=pltpu.PrefetchScalarGridSpec(
            num_scalar_prefetch=0,
            grid=grid,
            in_specs=[
                # moving x stream: (TB, SC, H) f32 chunk per step
                pl.BlockSpec((TB, SC, H), lambda bi, si: (bi, si, 0)),
                # constant weight/bias: single-buffered (nothing to prefetch)
                pl.BlockSpec((H, H), lambda bi, si: (0, 0),
                             pipeline_mode=pl.Buffered(1)),
                pl.BlockSpec((1, H), lambda bi, si: (0, 0),
                             pipeline_mode=pl.Buffered(1)),
            ],
            out_specs=pl.BlockSpec((TB, H), lambda bi, si: (bi, 0)),
            scratch_shapes=[pltpu.VMEM((TB, H), jnp.float32)],
        ),
        compiler_params=pltpu.CompilerParams(
            dimension_semantics=("parallel", "arbitrary"),
            vmem_limit_bytes=vmem_limit,
        ),
    )(x.astype(jnp.float32), w_bf, b_f32)

    return out


def _reference(x, w, b, *, normalize=True):
    # Emulate the kernel's bf16 operand precision, f32 accumulation/math.
    xb = x.astype(jnp.bfloat16).astype(jnp.float32)
    wb = w.astype(jnp.bfloat16).astype(jnp.float32)
    h = jnp.tanh(jnp.einsum("bsh,hk->bsk", xb, wb) + b.astype(jnp.float32))
    pooled = jnp.mean(h, axis=1)
    if normalize:
        pooled = pooled * jax.lax.rsqrt(
            jnp.sum(pooled * pooled, axis=-1, keepdims=True) + 1e-12
        )
    return pooled


if __name__ == "__main__":
    B, S, H = 2, 8, 32
    key = jax.random.PRNGKey(0)
    kx, kw, kb = jax.random.split(key, 3)

    x = jax.random.normal(kx, (B, S, H), dtype=jnp.float32)
    # deterministic "context_embedder" parameters
    w = jax.random.normal(kw, (H, H), dtype=jnp.float32) * (1.0 / jnp.sqrt(H))
    b = jax.random.normal(kb, (1, H), dtype=jnp.float32) * 0.02

    out = base_encoder_forward(x, w, b, normalize=True)
    out = jax.block_until_ready(out)

    ref = _reference(x, w, b, normalize=True)
    assert out.shape == (B, H)
    assert jnp.allclose(out, ref, atol=1e-2, rtol=1e-2), "mismatch vs reference"

    print("KERNEL_OK")
</pallas_src>

<mosaic_0001>
module attributes {stable_mosaic.version = 11 : i64} {
  func.func @_encoder_kernel(%arg0: i32, %arg1: i32, %arg2: memref<2x8x32xf32, #tpu.memory_space<vmem>>, %arg3: memref<32x32xbf16, #tpu.memory_space<vmem>>, %arg4: memref<1x32xf32, #tpu.memory_space<vmem>>, %arg5: memref<2x32xf32, #tpu.memory_space<vmem>>, %arg6: memref<2x32xf32, #tpu.memory_space<vmem>>) attributes {dimension_semantics = [#tpu.dimension_semantics<parallel>, #tpu.dimension_semantics<arbitrary>], iteration_bounds = array<i64: 1, 1>, scalar_prefetch = 0 : i64, scratch_operands = 1 : i64, tpu.core_type = #tpu.core_type<tc>, window_params = [{transform_indices = @transform_0, window_bounds = array<i64: 2, 8, 32>}, {pipeline_mode = #tpu.pipeline_mode<synchronous>, transform_indices = @transform_1, window_bounds = array<i64: 32, 32>}, {pipeline_mode = #tpu.pipeline_mode<synchronous>, transform_indices = @transform_2, window_bounds = array<i64: 1, 32>}, {transform_indices = @transform_3, window_bounds = array<i64: 2, 32>}]} {
    %c0_i32 = arith.constant 0 : i32
    %0 = arith.cmpi eq, %arg1, %c0_i32 : i32
    %1 = arith.extui %0 : i1 to i32
    %c0_i32_0 = arith.constant 0 : i32
    %2 = arith.cmpi ne, %1, %c0_i32_0 : i32
    scf.if %2 {
      %cst_16 = arith.constant 0.000000e+00 : f32
      %30 = vector.broadcast %cst_16 : f32 to vector<2x32xf32>
      %c0_17 = arith.constant 0 : index
      %c0_18 = arith.constant 0 : index
      %31 = vector.load %arg6[%c0_17, %c0_18] : memref<2x32xf32, #tpu.memory_space<vmem>>, vector<2x32xf32>
      tpu.vector_store %arg6[%c0_17, %c0_18], %30 {strides = array<i32>} : memref<2x32xf32, #tpu.memory_space<vmem>>, vector<2x32xf32>,
    } else {
    }
    %c0 = arith.constant 0 : index
    %c0_1 = arith.constant 0 : index
    %c0_2 = arith.constant 0 : index
    %3 = vector.load %arg2[%c0, %c0_1, %c0_2] : memref<2x8x32xf32, #tpu.memory_space<vmem>>, vector<2x8x32xf32>
    %4 = vector.shape_cast %3 : vector<2x8x32xf32> to vector<16x32xf32>
    %5 = arith.truncf %4 : vector<16x32xf32> to vector<16x32xbf16>
    %c0_3 = arith.constant 0 : index
    %c0_4 = arith.constant 0 : index
    %6 = vector.load %arg3[%c0_3, %c0_4] : memref<32x32xbf16, #tpu.memory_space<vmem>>, vector<32x32xbf16>
    %c0_5 = arith.constant 0 : index
    %c0_6 = arith.constant 0 : index
    %7 = vector.load %arg4[%c0_5, %c0_6] : memref<1x32xf32, #tpu.memory_space<vmem>>, vector<1x32xf32>
    %cst = arith.constant dense<0.000000e+00> : vector<16x32xf32>
    %8 = tpu.matmul %5, %6, %cst {dimension_numbers = #tpu.dot_dimension_numbers<[1], [0], [0], [1], [0, 0, 1, 1], [], []>} : vector<16x32xbf16>, vector<32x32xbf16>, vector<16x32xf32> -> vector<16x32xf32>
    %9 = vector.broadcast %7 : vector<1x32xf32> to vector<16x32xf32>
    %10 = arith.addf %8, %9 : vector<16x32xf32>
    %11 = math.tanh %10 : vector<16x32xf32>
    %12 = vector.shape_cast %11 : vector<16x32xf32> to vector<2x8x32xf32>
    %13 = tpu.iota {dimensions = array<i32: 1>} : vector<2x8x1xi32>
    %c8_i32 = arith.constant 8 : i32
    %14 = arith.muli %arg1, %c8_i32 : i32
    %15 = vector.broadcast %14 : i32 to vector<2x8x1xi32>
    %16 = arith.addi %15, %13 : vector<2x8x1xi32>
    %c8_i32_7 = arith.constant 8 : i32
    %17 = vector.broadcast %c8_i32_7 : i32 to vector<2x8x1xi32>
    %18 = arith.cmpi slt, %16, %17 : vector<2x8x1xi32>
    %cst_8 = arith.constant 0.000000e+00 : f32
    %19 = vector.shape_cast %18 : vector<2x8x1xi1> to vector<2x8x1xi1>
    %20 = vector.broadcast %19 : vector<2x8x1xi1> to vector<2x8x32xi1>
    %21 = vector.broadcast %cst_8 : f32 to vector<2x8x32xf32>
    %22 = arith.select %20, %12, %21 : vector<2x8x32xi1>, vector<2x8x32xf32>
    %c0_9 = arith.constant 0 : index
    %c0_10 = arith.constant 0 : index
    %23 = vector.load %arg6[%c0_9, %c0_10] : memref<2x32xf32, #tpu.memory_space<vmem>>, vector<2x32xf32>
    %cst_11 = arith.constant dense<0.000000e+00> : vector<2x32xf32>
    %24 = vector.multi_reduction <add>, %22, %cst_11 [1] : vector<2x8x32xf32> to vector<2x32xf32>
    %25 = arith.addf %23, %24 : vector<2x32xf32>
    %c0_12 = arith.constant 0 : index
    %c0_13 = arith.constant 0 : index
    %26 = vector.load %arg6[%c0_12, %c0_13] : memref<2x32xf32, #tpu.memory_space<vmem>>, vector<2x32xf32>
    tpu.vector_store %arg6[%c0_12, %c0_13], %25 {strides = array<i32>} : memref<2x32xf32, #tpu.memory_space<vmem>>, vector<2x32xf32>,
    %c0_i32_14 = arith.constant 0 : i32
    %27 = arith.cmpi eq, %arg1, %c0_i32_14 : i32
    %28 = arith.extui %27 : i1 to i32
    %c0_i32_15 = arith.constant 0 : i32
    %29 = arith.cmpi ne, %28, %c0_i32_15 : i32
    scf.if %29 {
      %c0_16 = arith.constant 0 : index
      %c0_17 = arith.constant 0 : index
      %30 = vector.load %arg6[%c0_16, %c0_17] : memref<2x32xf32, #tpu.memory_space<vmem>>, vector<2x32xf32>
      %cst_18 = arith.constant 1.250000e-01 : f32
      %31 = vector.broadcast %cst_18 : f32 to vector<2x32xf32>
      %32 = arith.mulf %30, %31 : vector<2x32xf32>
      %33 = arith.mulf %32, %32 : vector<2x32xf32>
      %cst_19 = arith.constant dense<0.000000e+00> : vector<2xf32>
      %34 = vector.multi_reduction <add>, %33, %cst_19 [1] : vector<2x32xf32> to vector<2xf32>
      %35 = vector.shape_cast %34 : vector<2xf32> to vector<2x1xf32>
      %cst_20 = arith.constant 9.99999996E-13 : f32
      %36 = vector.broadcast %cst_20 : f32 to vector<2x1xf32>
      %37 = arith.addf %35, %36 : vector<2x1xf32>
      %38 = math.rsqrt %37 : vector<2x1xf32>
      %39 = vector.broadcast %38 : vector<2x1xf32> to vector<2x32xf32>
      %40 = arith.mulf %32, %39 : vector<2x32xf32>
      %c0_21 = arith.constant 0 : index
      %c0_22 = arith.constant 0 : index
      %41 = vector.load %arg5[%c0_21, %c0_22] : memref<2x32xf32, #tpu.memory_space<vmem>>, vector<2x32xf32>
      tpu.vector_store %arg5[%c0_21, %c0_22], %40 {strides = array<i32>} : memref<2x32xf32, #tpu.memory_space<vmem>>, vector<2x32xf32>,
    } else {
    }
    return
  }
  func.func @transform_0(%arg0: i32, %arg1: i32) -> (i32, i32, i32) {
    %c0_i32 = arith.constant 0 : i32
    %c0_i32_0 = arith.constant 0 : i32
    return %arg0, %arg1, %c0_i32 : i32, i32, i32
  }
  func.func @transform_1(%arg0: i32, %arg1: i32) -> (i32, i32) {
    %c0_i32 = arith.constant 0 : i32
    %c0_i32_0 = arith.constant 0 : i32
    %c0_i32_1 = arith.constant 0 : i32
    return %c0_i32, %c0_i32_0 : i32, i32
  }
  func.func @transform_2(%arg0: i32, %arg1: i32) -> (i32, i32) {
    %c0_i32 = arith.constant 0 : i32
    %c0_i32_0 = arith.constant 0 : i32
    %c0_i32_1 = arith.constant 0 : i32
    return %c0_i32, %c0_i32_0 : i32, i32
  }
  func.func @transform_3(%arg0: i32, %arg1: i32) -> (i32, i32) {
    %c0_i32 = arith.constant 0 : i32
    %c0_i32_0 = arith.constant 0 : i32
    return %arg0, %c0_i32 : i32, i32
  }
}

</mosaic_0001>

<llo_original>
// kernel: tpu_custom_call.1
$region0: #{tpu_custom_call.1}
  #allocation0 [shape = 'u32[]', space=smem, size = 0x4, offset = 0x4, fixed_abs, tag = 'smem constant byte address 0x4 - core index']
  #allocation1 [shape = 'u32[144,128]{1,0:T(1,128)}', space=vmem, size = 0x12000, scoped, tag = 'internal scratch']
  #allocation2 [shape = 'f32[2,32]{1,0:T(2,128)}', space=vmem, size = 0x400, scoped, tag = 'scratch operand']
  %s0 = inlined_call_operand.hbm [shape: f32[2,8,32], index: 0, kind: input, shape index: {}]
  %s1 = inlined_call_operand.hbm [shape: bf16[32,32], index: 1, kind: input, shape index: {}]
  %s2 = inlined_call_operand.vmem [shape: f32[1,32], index: 2, kind: input, shape index: {}]
  %s3 = inlined_call_operand.hbm [shape: f32[2,32], index: 3, kind: output, shape index: {}]
  %s4 = sld [smem:[#allocation0]]
  $region38: #{tpu_custom_call.1} parent=0
    _
  %s6 = ssub.s32 1, %s4
  %s7 = scalar_select 0, %s6, %s4
  $region1: #{tpu_custom_call.1} parent=0
    #allocation3 [shape = 'u8[8192]{0}', space=vmem, size = 0x2000, scoped, tag = 'input window, operand 0, single buffered']
    #allocation4 [shape = 's32[1]{0}', space=sflag, size = 0x4, scoped, tag = 'scoped memory for tpu_custom_call.1']
    #allocation5 [shape = 's32[1]{0}', space=sflag, size = 0x4, scoped, tag = 'scoped memory for tpu_custom_call.1']
    #allocation6 [shape = 'u8[8192]{0}', space=vmem, size = 0x2000, scoped, tag = 'input window, operand 1, single buffered']
    #allocation7 [shape = 's32[1]{0}', space=sflag, size = 0x4, scoped, tag = 'scoped memory for tpu_custom_call.1']
    #allocation8 [shape = 'u8[1024]{0}', space=vmem, size = 0x400, scoped, tag = 'output window, operand 0, single buffered']
    %8 = vsyncpa [#allocation4], 0
    %9 = vsyncpa [#allocation7], 0
    %10 = vsyncpa [#allocation5], 0
    // Predicated region
    $region2: #{tpu_custom_call.1} parent=1 // pred_check
      _
    $region3: #{tpu_custom_call.1} parent=1 // pred_check_branch
      %12 = sbr.rel (0) target = $region5
    $region4: #{tpu_custom_call.1} parent=1 // pred_region
      %s14 = ssub.s32 256, 256
      %15 = vsyncadd [#allocation4], %s14
      %s16 = sshll.u32 [#allocation3], 4
      %s17 = int_to_ptr.vmem [resolvable:$true] %s16
      %22 = dma.hbm_to_vmem [thread:$0]  %s0, 256, %s17, [#allocation4], 128, 128, 8
    $region5: #{tpu_custom_call.1} parent=1 // pred_fallthru
      _
    // Predicated region
    $region6: #{tpu_custom_call.1} parent=1 // pred_check
      _
    $region7: #{tpu_custom_call.1} parent=1 // pred_check_branch
      %24 = sbr.rel (0) target = $region9
    $region8: #{tpu_custom_call.1} parent=1 // pred_region
      %s26 = ssub.s32 256, 256
      %27 = vsyncadd [#allocation7], %s26
      %s28 = sshll.u32 [#allocation6], 4
      %s29 = int_to_ptr.vmem [resolvable:$true] %s28
      %34 = dma.hbm_to_vmem [thread:$0]  %s1, 256, %s29, [#allocation7], 64, 64, 4
    $region9: #{tpu_custom_call.1} parent=1 // pred_fallthru
      _
    // Predicated region
    $region10: #{tpu_custom_call.1} parent=1 // pred_check
      _
    $region11: #{tpu_custom_call.1} parent=1 // pred_check_branch
      %36 = sbr.rel (0) target = $region13
    $region12: #{tpu_custom_call.1} parent=1 // pred_region
      _
    $region13: #{tpu_custom_call.1} parent=1 // pred_fallthru
      _
    // Predicated region
    $region14: #{tpu_custom_call.1} parent=1 // pred_check
      _
    $region15: #{tpu_custom_call.1} parent=1 // pred_check_branch
      %38 = sbr.rel (0) target = $region17
    $region16: #{tpu_custom_call.1} parent=1 // pred_region
      %39 = dma.done [#allocation4], 256
    $region17: #{tpu_custom_call.1} parent=1 // pred_fallthru
      _
    // Predicated region
    $region18: #{tpu_custom_call.1} parent=1 // pred_check
      _
    $region19: #{tpu_custom_call.1} parent=1 // pred_check_branch
      %41 = sbr.rel (0) target = $region21
    $region20: #{tpu_custom_call.1} parent=1 // pred_region
      %42 = dma.done [#allocation7], 256
    $region21: #{tpu_custom_call.1} parent=1 // pred_fallthru
      _
    %p44 = scmp.eq.s32.totalorder 0, 0
    // Predicated region
    $region22: #{tpu_custom_call.1} parent=1 // pred_check
      %p45 = pneg %p44
    $region23: #{tpu_custom_call.1} parent=1 // pred_check_branch
      %47 = sbr.rel (%p45) target = $region25
    $region24: #{tpu_custom_call.1} parent=1 // pred_region
      %vm48 = vcmask 254976
      %49 = vst.msk [vmem:[#allocation2] sm:$0x3] %vm48, 0.0
    $region25: #{tpu_custom_call.1} parent=1 // pred_fallthru
      _
    %v50 = vld [vmem:[#allocation3] sm:$0xff]
    %v51 = vld [vmem:[#allocation3 + $0x8] sm:$0xff]
    %v52 = vpack.c.bf16 %v51, %v50
    %v53 = vld [vmem:[#allocation6] sm:$0xf]
    %v54 = vld [vmem:[#allocation6 + $0x4] sm:$0xf]
    %v55 = vld [vmem:[#allocation6 + $0x8] sm:$0xf]
    %v56 = vld [vmem:[#allocation6 + $0xc] sm:$0xf]
    %v57 = vld [vmem:[%s2] sm:$0x1]
    %v59 = vlaneseq
    %v60 = vshrl.u32 %v59, 7
    %v61 = vsub.s32 0, %v60
    %v62 = vrot.slane %v57, %v61
    %v68 = vunpack.c.l.b16 %v53
    %v69 = vunpack.c.l.b16 %v54
    %v70 = vunpack.c.l.b16 %v55
    %v71 = vunpack.c.l.b16 %v56
    %v72 = vpack.c.b16 %v69, %v68
    %v73 = vpack.c.b16 %v71, %v70
    %vm76 = vcmask 261120
    %v78 = vsel %vm76, %v52, 0
    %80 = vmatprep.subr.bf16.mxu0 0
    %81 = vmatpush1.bf16.msra.mxu0 %v72
    %82 = vmatprep.subr.bf16.mxu0 0
    %83 = vmatpush1.bf16.msra.mxu0 %v73
    %84 = vmatprep.subr.bf16.mxu0 0
    %85 = vmatpush1.bf16.msra.mxu0 0
    %86 = vmatprep.subr.bf16.mxu0 0
    %87 = vmatpush1.bf16.msra.mxu0 0
    %88 = vmatprep.subr.bf16.mxu0 0
    %89 = vmatpush1.bf16.msra.mxu0 0
    %90 = vmatprep.subr.bf16.mxu0 0
    %91 = vmatpush1.bf16.msra.mxu0 0
    %92 = vmatprep.subr.bf16.mxu0 0
    %93 = vmatpush1.bf16.msra.mxu0 0
    %94 = vmatprep.subr.bf16.mxu0 0
    %95 = vmatpush1.bf16.msra.mxu0 0
    %96 = vmatprep.subr.bf16.mxu0 0
    %97 = vmatpush1.bf16.msra.mxu0 0
    %98 = vmatprep.subr.bf16.mxu0 0
    %99 = vmatpush1.bf16.msra.mxu0 0
    %100 = vmatprep.subr.bf16.mxu0 0
    %101 = vmatpush1.bf16.msra.mxu0 0
    %102 = vmatprep.subr.bf16.mxu0 0
    %103 = vmatpush1.bf16.msra.mxu0 0
    %104 = vmatprep.subr.bf16.mxu0 0
    %105 = vmatpush1.bf16.msra.mxu0 0
    %106 = vmatprep.subr.bf16.mxu0 0
    %107 = vmatpush1.bf16.msra.mxu0 0
    %108 = vmatprep.subr.bf16.mxu0 0
    %109 = vmatpush1.bf16.msra.mxu0 0
    %110 = vmatprep.subr.bf16.mxu0 0
    %111 = vmatpush1.bf16.msra.mxu0 0
    %112 = vmatprep.mubr.bf16.mxu0 0
    %113 = vmatmul.mubr.bf16.gmra.mrb[0].mxu0 %v78
    %v114 = vpop.f32.mrb[0].mxu0
    %v115 = vadd.f32 %v62, %v114
    %v116 = vpop.f32.mrb[0].mxu0
    %v117 = vpop.f32.mrb[0].mxu0
    %v118 = vadd.f32 %v62, %v117
    %v119 = vpop.f32.mrb[0].mxu0
    %120 = vdwg.mxu0
    %v121 = vtanh.pop %v115
    %v122 = vtanh.pop %v118
    %v123 = vlaneseq
    %v124 = vshrl.u32 %v123, 7
    %s125 = smul.u32 0, 8
    %v126 = vstv %s125
    %v127 = vadd.s32 %v126, %v124
    %vm128 = vcmp.lt.s32.totalorder %v127, 8
    %v129 = vsel %vm128, 1, 0
    %vm130 = vcmp.eq.s32.totalorder %v129, 1
    %v131 = vsel %vm130, %v121, 0.0
    %v132 = vsel %vm130, %v122, 0.0
    %v133 = vld [vmem:[#allocation2] sm:$0x3]
    %v134 = vsel %vm76, %v131, 0.0
    %v135 = vrot.slane %v134, 4
    %v136 = vadd.f32 %v134, %v135
    %v137 = vrot.slane %v136, 2
    %v138 = vadd.f32 %v136, %v137
    %v139 = vrot.slane %v138, 1
    %v140 = vadd.f32 %v138, %v139
    %v141 = vsel %vm76, %v132, 0.0
    %v142 = vrot.slane %v141, 4
    %v143 = vadd.f32 %v141, %v142
    %v144 = vrot.slane %v143, 2
    %v145 = vadd.f32 %v143, %v144
    %v146 = vrot.slane %v145, 1
    %v147 = vadd.f32 %v145, %v146
    %vm150 = vcmask 1041409
    %v151 = vsel %vm150, %v147, %v140
    %v153 = vadd.f32 %v133, %v151
    %vm154 = vcmask 254976
    %155 = vst.msk [vmem:[#allocation2] sm:$0x3] %vm154, %v153
    // Predicated region
    $region26: #{tpu_custom_call.1} parent=1 // pred_check
      %p156 = pneg %p44
    $region27: #{tpu_custom_call.1} parent=1 // pred_check_branch
      %158 = sbr.rel (%p156) target = $region29
    $region28: #{tpu_custom_call.1} parent=1 // pred_region
      %v159 = vld [vmem:[#allocation2] sm:$0x3]
      %v160 = vmul.f32 %v159, 0.125
      %v161 = vmul.f32 %v160, %v160
      %v162 = vsel %vm154, %v161, 0.0
      %163 = vadd.xlane.f32.xlu0 %v162
      %v164 = vpop.xlane.xlu0 %163
      %v165 = vadd.f32 %v164, 1e-12
      %v166 = vrsqrt.pop %v165
      %v167 = vmul.f32 %v160, %v166
      %168 = vst.msk [vmem:[#allocation8] sm:$0x3] %vm154, %v167
    $region29: #{tpu_custom_call.1} parent=1 // pred_fallthru
      _
    // Predicated region
    $region30: #{tpu_custom_call.1} parent=1 // pred_check
      _
    $region31: #{tpu_custom_call.1} parent=1 // pred_check_branch
      %170 = sbr.rel (0) target = $region33
    $region32: #{tpu_custom_call.1} parent=1 // pred_region
      %s172 = ssub.s32 32, 32
      %173 = vsyncadd [#allocation5], %s172
      %s175 = sshll.u32 [#allocation8], 4
      %s176 = int_to_ptr.vmem [resolvable:$true] %s175
      %178 = dma.vmem_to_hbm [thread:$0]  %s176, 32, %s3, [#allocation5]
    $region33: #{tpu_custom_call.1} parent=1 // pred_fallthru
      _
    // Predicated region
    $region34: #{tpu_custom_call.1} parent=1 // pred_check
      _
    $region35: #{tpu_custom_call.1} parent=1 // pred_check_branch
      %180 = sbr.rel (0) target = $region37
    $region36: #{tpu_custom_call.1} parent=1 // pred_region
      %181 = dma.done [#allocation5], 32
    $region37: #{tpu_custom_call.1} parent=1 // pred_fallthru
      _
    %182 = vsyncpa [#allocation4], 1
    %183 = vsyncpa [#allocation7], 1
    %184 = vsyncpa [#allocation5], 1

</llo_original>
